<compile_context>
chip_gen: v5e
topology: v5e:2x2
jax: 0.10.0
libtpu: 0.0.40
codegen_flags: <defaults>
</compile_context>

<pallas_src>
import functools

import jax
import jax.numpy as jnp
from jax.experimental import pallas as pl
from jax.experimental.pallas import tpu as pltpu

LANE = 128  # vreg lane width; all feature dims are padded to a multiple of this.


def _round_up(x, m):
    return (x + m - 1) // m * m


def _mlp_kernel(x_ref, w1_ref, w2_ref, w3_ref, b_ref, o_ref, *, h1, h2, c):
    """Fused 3-layer MLP (eval-mode SAEClassifier, BN folded, dropout=identity):

        h = relu(x @ W1' + b1')
        h = relu(h @ W2' + b2')
        o = h @ W3 + b3
    """
    x = x_ref[...]
    # Static, 128-aligned slices of the concatenated bias operand (zero-cost views).
    b1 = b_ref[:, 0:h1]
    b2 = b_ref[:, h1:h1 + h2]
    b3 = b_ref[:, h1 + h2:h1 + h2 + c]

    h = jnp.dot(x, w1_ref[...], preferred_element_type=jnp.float32)
    h = jnp.maximum(h + b1, 0.0)
    h = jnp.dot(h, w2_ref[...], preferred_element_type=jnp.float32)
    h = jnp.maximum(h + b2, 0.0)
    o_ref[...] = jnp.dot(h, w3_ref[...], preferred_element_type=jnp.float32) + b3


def sae_classifier_forward(x, kernel_params, *, num_classes, batch_tile=512):
    """Runs the fused SAEClassifier eval-mode forward with a Pallas kernel.

    x:             [B, input_dim] float32 (B and input_dim need not be padded).
    kernel_params: dict from fold_and_pad_params (lane-padded, BN-folded).
    num_classes:   logical number of output classes (static Python int).
    batch_tile:    rows per grid step (>=256 recommended; B is zero-padded up
                   to a multiple of it).
    """
    B, D0 = x.shape
    d0p, h1p = kernel_params["w1"].shape
    h2p = kernel_params["w2"].shape[1]
    cp = kernel_params["w3"].shape[1]

    # Zero-pad batch to a multiple of batch_tile and features to the padded
    # input width. Padded rows/cols contribute nothing (weights are zero there)
    # and are sliced off at the end.
    bp = _round_up(max(B, 1), batch_tile)
    xp = jnp.zeros((bp, d0p), jnp.float32).at[:B, :D0].set(x)

    grid = (bp // batch_tile,)

    def full(shape):
        # Whole (small) parameter tensors resident per grid step.
        return pl.BlockSpec(shape, lambda i: tuple(0 for _ in shape))

    kernel = functools.partial(_mlp_kernel, h1=h1p, h2=h2p, c=cp)

    out = pl.pallas_call(
        kernel,
        out_shape=jax.ShapeDtypeStruct((bp, cp), jnp.float32),
        grid_spec=pltpu.PrefetchScalarGridSpec(
            num_scalar_prefetch=0,
            grid=grid,
            in_specs=[
                pl.BlockSpec((batch_tile, d0p), lambda i: (i, 0)),  # x tile
                full((d0p, h1p)),                                   # W1 (BN-folded)
                full((h1p, h2p)),                                   # W2 (BN-folded)
                full((h2p, cp)),                                    # W3
                full((1, h1p + h2p + cp)),                          # [b1|b2|b3]
            ],
            out_specs=pl.BlockSpec((batch_tile, cp), lambda i: (i, 0)),
        ),
        compiler_params=pltpu.CompilerParams(
            dimension_semantics=("parallel",)),
    )(xp, kernel_params["w1"], kernel_params["w2"], kernel_params["w3"],
      kernel_params["b"])

    return out[:B, :num_classes]


def make_raw_params(key, input_dim, hidden_dims, num_classes):
    """Deterministic synthetic parameters matching SAEClassifier's shapes.

    Weights are stored transposed relative to PyTorch nn.Linear ([in, out]).
    """
    assert len(hidden_dims) == 2, "kernel is specialized for 2 hidden layers"
    dims = [input_dim] + list(hidden_dims)
    keys = jax.random.split(key, 16)
    ki = iter(range(16))

    def lin(d_in, d_out):
        bound = 1.0 / jnp.sqrt(d_in)
        w_t = jax.random.uniform(keys[next(ki)], (d_in, d_out), jnp.float32,
                                 -bound, bound)
        b = jax.random.uniform(keys[next(ki)], (d_out,), jnp.float32,
                               -bound, bound)
        return w_t, b

    def bn(d):
        gamma = 1.0 + 0.1 * jax.random.normal(keys[next(ki)], (d,), jnp.float32)
        beta = 0.1 * jax.random.normal(keys[next(ki)], (d,), jnp.float32)
        mean = 0.05 * jax.random.normal(keys[next(ki)], (d,), jnp.float32)
        var = jnp.abs(1.0 + 0.1 * jax.random.normal(keys[next(ki)], (d,),
                                                    jnp.float32))
        return gamma, beta, mean, var

    w1, b1 = lin(dims[0], dims[1])
    g1, be1, m1, v1 = bn(dims[1])
    w2, b2 = lin(dims[1], dims[2])
    g2, be2, m2, v2 = bn(dims[2])
    w3, b3 = lin(dims[2], num_classes)

    return dict(w1=w1, b1=b1, g1=g1, be1=be1, m1=m1, v1=v1,
                w2=w2, b2=b2, g2=g2, be2=be2, m2=m2, v2=v2,
                w3=w3, b3=b3)


def fold_and_pad_params(raw, eps=1e-5):
    """Folds eval-mode BN into Linear weights/bias and lane-pads all dims to 128.

    y = BN(x @ W + b) = (x @ (W * s)) + ((b - mean) * s + beta),
        s = gamma / sqrt(var + eps)
    """
    def fold(w, b, g, beta, mean, var):
        s = g / jnp.sqrt(var + eps)
        return w * s[None, :], (b - mean) * s + beta

    w1, b1 = fold(raw["w1"], raw["b1"], raw["g1"], raw["be1"], raw["m1"], raw["v1"])
    w2, b2 = fold(raw["w2"], raw["b2"], raw["g2"], raw["be2"], raw["m2"], raw["v2"])
    w3, b3 = raw["w3"], raw["b3"]

    d0, h1 = w1.shape
    h2 = w2.shape[1]
    c = w3.shape[1]
    d0p, h1p, h2p, cp = (_round_up(d, LANE) for d in (d0, h1, h2, c))

    def pad_mat(w, rows, cols):
        return jnp.zeros((rows, cols), jnp.float32).at[:w.shape[0], :w.shape[1]].set(w)

    def pad_vec(b, cols):
        return jnp.zeros((1, cols), jnp.float32).at[0, :b.shape[0]].set(b)

    return dict(
        w1=pad_mat(w1, d0p, h1p),
        w2=pad_mat(w2, h1p, h2p),
        w3=pad_mat(w3, h2p, cp),
        b=jnp.concatenate([pad_vec(b1, h1p), pad_vec(b2, h2p), pad_vec(b3, cp)],
                          axis=1),
    )


def reference_forward(x, raw, eps=1e-5):
    """Pure-JAX reference of the PyTorch eval-mode forward."""
    h = x @ raw["w1"] + raw["b1"]
    h = (h - raw["m1"]) / jnp.sqrt(raw["v1"] + eps) * raw["g1"] + raw["be1"]
    h = jnp.maximum(h, 0.0)
    h = h @ raw["w2"] + raw["b2"]
    h = (h - raw["m2"]) / jnp.sqrt(raw["v2"] + eps) * raw["g2"] + raw["be2"]
    h = jnp.maximum(h, 0.0)
    return h @ raw["w3"] + raw["b3"]


if __name__ == "__main__":
    # Small shapes consistent with the module: SAE vectors of dim 32,
    # hidden_dims=[64, 32], num_classes=3.
    INPUT_DIM = 32
    HIDDEN_DIMS = [64, 32]
    NUM_CLASSES = 3
    BATCH_TILE = 256

    key = jax.random.PRNGKey(0)
    kx, kparams, kx2 = jax.random.split(key, 3)

    raw = make_raw_params(kparams, INPUT_DIM, HIDDEN_DIMS, NUM_CLASSES)
    kernel_params = fold_and_pad_params(raw)

    fwd = jax.jit(functools.partial(sae_classifier_forward,
                                    num_classes=NUM_CLASSES,
                                    batch_tile=BATCH_TILE))

    # Tiny batch (padded up to one 256-row tile inside the wrapper).
    x = jax.random.normal(kx, (8, INPUT_DIM), dtype=jnp.float32)
    out = fwd(x, kernel_params)
    jax.block_until_ready(out)
    ref = reference_forward(x, raw)
    assert out.shape == (8, NUM_CLASSES)
    assert jnp.allclose(out, ref, atol=1e-4, rtol=1e-4)

    # Ragged batch (B=300 -> padded to 512, 2 parallel grid steps).
    x2 = jax.random.normal(kx2, (300, INPUT_DIM), dtype=jnp.float32)
    out2 = fwd(x2, kernel_params)
    jax.block_until_ready(out2)
    ref2 = reference_forward(x2, raw)
    assert out2.shape == (300, NUM_CLASSES)
    assert jnp.allclose(out2, ref2, atol=1e-4, rtol=1e-4)

    print("KERNEL_OK")
</pallas_src>

<mosaic_0001>
module attributes {stable_mosaic.version = 11 : i64} {
  func.func @_mlp_kernel(%arg0: i32, %arg1: memref<256x128xf32, #tpu.memory_space<vmem>>, %arg2: memref<128x128xf32, #tpu.memory_space<vmem>>, %arg3: memref<128x128xf32, #tpu.memory_space<vmem>>, %arg4: memref<128x128xf32, #tpu.memory_space<vmem>>, %arg5: memref<1x384xf32, #tpu.memory_space<vmem>>, %arg6: memref<256x128xf32, #tpu.memory_space<vmem>>) attributes {dimension_semantics = [#tpu.dimension_semantics<parallel>], iteration_bounds = array<i64: 1>, scalar_prefetch = 0 : i64, scratch_operands = 0 : i64, tpu.core_type = #tpu.core_type<tc>, window_params = [{transform_indices = @transform_0, window_bounds = array<i64: 256, 128>}, {pipeline_mode = #tpu.pipeline_mode<synchronous>, transform_indices = @transform_1, window_bounds = array<i64: 128, 128>}, {pipeline_mode = #tpu.pipeline_mode<synchronous>, transform_indices = @transform_2, window_bounds = array<i64: 128, 128>}, {pipeline_mode = #tpu.pipeline_mode<synchronous>, transform_indices = @transform_3, window_bounds = array<i64: 128, 128>}, {pipeline_mode = #tpu.pipeline_mode<synchronous>, transform_indices = @transform_4, window_bounds = array<i64: 1, 384>}, {transform_indices = @transform_5, window_bounds = array<i64: 256, 128>}]} {
    %c0 = arith.constant 0 : index
    %c0_0 = arith.constant 0 : index
    %0 = vector.load %arg1[%c0, %c0_0] : memref<256x128xf32, #tpu.memory_space<vmem>>, vector<256x128xf32>
    %c0_1 = arith.constant 0 : index
    %c0_2 = arith.constant 0 : index
    %1 = vector.load %arg5[%c0_1, %c0_2] : memref<1x384xf32, #tpu.memory_space<vmem>>, vector<1x128xf32>
    %c0_3 = arith.constant 0 : index
    %c128 = arith.constant 128 : index
    %2 = vector.load %arg5[%c0_3, %c128] : memref<1x384xf32, #tpu.memory_space<vmem>>, vector<1x128xf32>
    %c0_4 = arith.constant 0 : index
    %c256 = arith.constant 256 : index
    %3 = vector.load %arg5[%c0_4, %c256] : memref<1x384xf32, #tpu.memory_space<vmem>>, vector<1x128xf32>
    %c0_5 = arith.constant 0 : index
    %c0_6 = arith.constant 0 : index
    %4 = vector.load %arg2[%c0_5, %c0_6] : memref<128x128xf32, #tpu.memory_space<vmem>>, vector<128x128xf32>
    %cst = arith.constant dense<0.000000e+00> : vector<256x128xf32>
    %5 = tpu.matmul %0, %4, %cst {dimension_numbers = #tpu.dot_dimension_numbers<[1], [0], [0], [1], [0, 0, 1, 1], [], []>} : vector<256x128xf32>, vector<128x128xf32>, vector<256x128xf32> -> vector<256x128xf32>
    %6 = vector.broadcast %1 : vector<1x128xf32> to vector<256x128xf32>
    %7 = arith.addf %5, %6 : vector<256x128xf32>
    %cst_7 = arith.constant 0.000000e+00 : f32
    %8 = vector.broadcast %cst_7 : f32 to vector<256x128xf32>
    %9 = arith.maximumf %7, %8 : vector<256x128xf32>
    %c0_8 = arith.constant 0 : index
    %c0_9 = arith.constant 0 : index
    %10 = vector.load %arg3[%c0_8, %c0_9] : memref<128x128xf32, #tpu.memory_space<vmem>>, vector<128x128xf32>
    %cst_10 = arith.constant dense<0.000000e+00> : vector<256x128xf32>
    %11 = tpu.matmul %9, %10, %cst_10 {dimension_numbers = #tpu.dot_dimension_numbers<[1], [0], [0], [1], [0, 0, 1, 1], [], []>} : vector<256x128xf32>, vector<128x128xf32>, vector<256x128xf32> -> vector<256x128xf32>
    %12 = vector.broadcast %2 : vector<1x128xf32> to vector<256x128xf32>
    %13 = arith.addf %11, %12 : vector<256x128xf32>
    %cst_11 = arith.constant 0.000000e+00 : f32
    %14 = vector.broadcast %cst_11 : f32 to vector<256x128xf32>
    %15 = arith.maximumf %13, %14 : vector<256x128xf32>
    %c0_12 = arith.constant 0 : index
    %c0_13 = arith.constant 0 : index
    %16 = vector.load %arg4[%c0_12, %c0_13] : memref<128x128xf32, #tpu.memory_space<vmem>>, vector<128x128xf32>
    %cst_14 = arith.constant dense<0.000000e+00> : vector<256x128xf32>
    %17 = tpu.matmul %15, %16, %cst_14 {dimension_numbers = #tpu.dot_dimension_numbers<[1], [0], [0], [1], [0, 0, 1, 1], [], []>} : vector<256x128xf32>, vector<128x128xf32>, vector<256x128xf32> -> vector<256x128xf32>
    %18 = vector.broadcast %3 : vector<1x128xf32> to vector<256x128xf32>
    %19 = arith.addf %17, %18 : vector<256x128xf32>
    %c0_15 = arith.constant 0 : index
    %c0_16 = arith.constant 0 : index
    %20 = vector.load %arg6[%c0_15, %c0_16] : memref<256x128xf32, #tpu.memory_space<vmem>>, vector<256x128xf32>
    tpu.vector_store %arg6[%c0_15, %c0_16], %19 {strides = array<i32>} : memref<256x128xf32, #tpu.memory_space<vmem>>, vector<256x128xf32>,
    return
  }
  func.func @transform_0(%arg0: i32) -> (i32, i32) {
    %c0_i32 = arith.constant 0 : i32
    %c0_i32_0 = arith.constant 0 : i32
    return %arg0, %c0_i32 : i32, i32
  }
  func.func @transform_1(%arg0: i32) -> (i32, i32) {
    %c0_i32 = arith.constant 0 : i32
    %c0_i32_0 = arith.constant 0 : i32
    %c0_i32_1 = arith.constant 0 : i32
    return %c0_i32, %c0_i32_0 : i32, i32
  }
  func.func @transform_2(%arg0: i32) -> (i32, i32) {
    %c0_i32 = arith.constant 0 : i32
    %c0_i32_0 = arith.constant 0 : i32
    %c0_i32_1 = arith.constant 0 : i32
    return %c0_i32, %c0_i32_0 : i32, i32
  }
  func.func @transform_3(%arg0: i32) -> (i32, i32) {
    %c0_i32 = arith.constant 0 : i32
    %c0_i32_0 = arith.constant 0 : i32
    %c0_i32_1 = arith.constant 0 : i32
    return %c0_i32, %c0_i32_0 : i32, i32
  }
  func.func @transform_4(%arg0: i32) -> (i32, i32) {
    %c0_i32 = arith.constant 0 : i32
    %c0_i32_0 = arith.constant 0 : i32
    %c0_i32_1 = arith.constant 0 : i32
    return %c0_i32, %c0_i32_0 : i32, i32
  }
  func.func @transform_5(%arg0: i32) -> (i32, i32) {
    %c0_i32 = arith.constant 0 : i32
    %c0_i32_0 = arith.constant 0 : i32
    return %arg0, %c0_i32 : i32, i32
  }
}

</mosaic_0001>

<llo_original>
// kernel: sae_classifier_forward.1
$region0: #{sae_classifier_forward.1}
  #allocation0 [shape = 'u32[]', space=smem, size = 0x4, offset = 0x4, fixed_abs, tag = 'smem constant byte address 0x4 - core index']
  #allocation1 [shape = 'u32[72,128]{1,0:T(1,128)}', space=vmem, size = 0x9000, scoped, tag = 'internal scratch']
  %s0 = inlined_call_operand.vmem [shape: f32[256,128], index: 0, kind: input, shape index: {}]
  %s1 = inlined_call_operand.vmem [shape: f32[128,128], index: 1, kind: input, shape index: {}]
  %s2 = inlined_call_operand.vmem [shape: f32[128,128], index: 2, kind: input, shape index: {}]
  %s3 = inlined_call_operand.hbm [shape: f32[128,128], index: 3, kind: input, shape index: {}]
  %s4 = inlined_call_operand.vmem [shape: f32[1,384], index: 4, kind: input, shape index: {}]
  %s5 = inlined_call_operand.vmem [shape: f32[256,128], index: 5, kind: output, shape index: {}]
  %s6 = sld [smem:[#allocation0]]
  $region34: #{sae_classifier_forward.1} parent=0
    _
  %s8 = ssub.s32 1, %s6
  %s9 = scalar_select 0, %s8, %s6
  $region1: #{sae_classifier_forward.1} parent=0
    #allocation2 [shape = 'u8[65536]{0}', space=vmem, size = 0x10000, scoped, tag = 'input window, operand 3, single buffered']
    #allocation3 [shape = 's32[1]{0}', space=sflag, size = 0x4, scoped, tag = 'scoped memory for sae_classifier_forward.1']
    %10 = vsyncpa [#allocation3], 0
    // Predicated region
    $region2: #{sae_classifier_forward.1} parent=1 // pred_check
      _
    $region3: #{sae_classifier_forward.1} parent=1 // pred_check_branch
      %12 = sbr.rel (0) target = $region5
    $region4: #{sae_classifier_forward.1} parent=1 // pred_region
      _
    $region5: #{sae_classifier_forward.1} parent=1 // pred_fallthru
      _
    // Predicated region
    $region6: #{sae_classifier_forward.1} parent=1 // pred_check
      _
    $region7: #{sae_classifier_forward.1} parent=1 // pred_check_branch
      %14 = sbr.rel (0) target = $region9
    $region8: #{sae_classifier_forward.1} parent=1 // pred_region
      _
    $region9: #{sae_classifier_forward.1} parent=1 // pred_fallthru
      _
    // Predicated region
    $region10: #{sae_classifier_forward.1} parent=1 // pred_check
      _
    $region11: #{sae_classifier_forward.1} parent=1 // pred_check_branch
      %16 = sbr.rel (0) target = $region13
    $region12: #{sae_classifier_forward.1} parent=1 // pred_region
      _
    $region13: #{sae_classifier_forward.1} parent=1 // pred_fallthru
      _
    // Predicated region
    $region14: #{sae_classifier_forward.1} parent=1 // pred_check
      _
    $region15: #{sae_classifier_forward.1} parent=1 // pred_check_branch
      %18 = sbr.rel (0) target = $region17
    $region16: #{sae_classifier_forward.1} parent=1 // pred_region
      %20 = vsyncadd [#allocation3], 0
      %s21 = sshll.u32 %s3, 4
      %s22 = int_to_ptr.hbm [resolvable:$true] %s21
      %s23 = sshll.u32 [#allocation2], 4
      %s24 = int_to_ptr.vmem [resolvable:$true] %s23
      %29 = dma.hbm_to_vmem [thread:$0]  %s22, 2048, %s24, [#allocation3], 128, 128, 8
    $region17: #{sae_classifier_forward.1} parent=1 // pred_fallthru
      _
    // Predicated region
    $region18: #{sae_classifier_forward.1} parent=1 // pred_check
      _
    $region19: #{sae_classifier_forward.1} parent=1 // pred_check_branch
      %31 = sbr.rel (0) target = $region21
    $region20: #{sae_classifier_forward.1} parent=1 // pred_region
      _
    $region21: #{sae_classifier_forward.1} parent=1 // pred_fallthru
      _
    // Predicated region
    $region22: #{sae_classifier_forward.1} parent=1 // pred_check
      _
    $region23: #{sae_classifier_forward.1} parent=1 // pred_check_branch
      %33 = sbr.rel (0) target = $region25
    $region24: #{sae_classifier_forward.1} parent=1 // pred_region
      %35 = dma.done [#allocation3], 2048
    $region25: #{sae_classifier_forward.1} parent=1 // pred_fallthru
      _
    %v36 = vld [vmem:[%s0] sm:$0xff]
    %v37 = vld [vmem:[%s0 + $0x8] sm:$0xff]
    %v38 = vld [vmem:[%s0 + $0x10] sm:$0xff]
    %v39 = vld [vmem:[%s0 + $0x18] sm:$0xff]
    %v40 = vld [vmem:[%s0 + $0x20] sm:$0xff]
    %v41 = vld [vmem:[%s0 + $0x28] sm:$0xff]
    %v42 = vld [vmem:[%s0 + $0x30] sm:$0xff]
    %v43 = vld [vmem:[%s0 + $0x38] sm:$0xff]
    %v44 = vld [vmem:[%s0 + $0x40] sm:$0xff]
    %v45 = vld [vmem:[%s0 + $0x48] sm:$0xff]
    %v46 = vld [vmem:[%s0 + $0x50] sm:$0xff]
    %v47 = vld [vmem:[%s0 + $0x58] sm:$0xff]
    %v48 = vld [vmem:[%s0 + $0x60] sm:$0xff]
    %v49 = vld [vmem:[%s0 + $0x68] sm:$0xff]
    %v50 = vld [vmem:[%s0 + $0x70] sm:$0xff]
    %v51 = vld [vmem:[%s0 + $0x78] sm:$0xff]
    %v52 = vld [vmem:[%s0 + $0x80] sm:$0xff]
    %v53 = vld [vmem:[%s0 + $0x88] sm:$0xff]
    %v54 = vld [vmem:[%s0 + $0x90] sm:$0xff]
    %v55 = vld [vmem:[%s0 + $0x98] sm:$0xff]
    %v56 = vld [vmem:[%s0 + $0xa0] sm:$0xff]
    %v57 = vld [vmem:[%s0 + $0xa8] sm:$0xff]
    %v58 = vld [vmem:[%s0 + $0xb0] sm:$0xff]
    %v59 = vld [vmem:[%s0 + $0xb8] sm:$0xff]
    %v60 = vld [vmem:[%s0 + $0xc0] sm:$0xff]
    %v61 = vld [vmem:[%s0 + $0xc8] sm:$0xff]
    %v62 = vld [vmem:[%s0 + $0xd0] sm:$0xff]
    %v63 = vld [vmem:[%s0 + $0xd8] sm:$0xff]
    %v64 = vld [vmem:[%s0 + $0xe0] sm:$0xff]
    %v65 = vld [vmem:[%s0 + $0xe8] sm:$0xff]
    %v66 = vld [vmem:[%s0 + $0xf0] sm:$0xff]
    %v67 = vld [vmem:[%s0 + $0xf8] sm:$0xff]
    %v68 = vld [vmem:[%s4] sm:$0x1]
    %v69 = vld [vmem:[%s4 + $0x1] sm:$0x1]
    %v70 = vld [vmem:[%s4 + $0x2] sm:$0x1]
    %v71 = vld [vmem:[%s1] sm:$0xff]
    %v72 = vld [vmem:[%s1 + $0x8] sm:$0xff]
    %v73 = vld [vmem:[%s1 + $0x10] sm:$0xff]
    %v74 = vld [vmem:[%s1 + $0x18] sm:$0xff]
    %v75 = vld [vmem:[%s1 + $0x20] sm:$0xff]
    %v76 = vld [vmem:[%s1 + $0x28] sm:$0xff]
    %v77 = vld [vmem:[%s1 + $0x30] sm:$0xff]
    %v78 = vld [vmem:[%s1 + $0x38] sm:$0xff]
    %v79 = vld [vmem:[%s1 + $0x40] sm:$0xff]
    %v80 = vld [vmem:[%s1 + $0x48] sm:$0xff]
    %v81 = vld [vmem:[%s1 + $0x50] sm:$0xff]
    %v82 = vld [vmem:[%s1 + $0x58] sm:$0xff]
    %v83 = vld [vmem:[%s1 + $0x60] sm:$0xff]
    %v84 = vld [vmem:[%s1 + $0x68] sm:$0xff]
    %v85 = vld [vmem:[%s1 + $0x70] sm:$0xff]
    %v86 = vld [vmem:[%s1 + $0x78] sm:$0xff]
    %v88 = vperm.slane %v68, 0
    %90 = vmatpush.msra.mxu0 %v86
    %91 = vmatpush.msra.mxu0 %v85
    %92 = vmatpush.msra.mxu0 %v84
    %93 = vmatpush.msra.mxu0 %v83
    %94 = vmatpush.msra.mxu0 %v82
    %95 = vmatpush.msra.mxu0 %v81
    %96 = vmatpush.msra.mxu0 %v80
    %97 = vmatpush.msra.mxu0 %v79
    %98 = vmatpush.msra.mxu0 %v78
    %99 = vmatpush.msra.mxu0 %v77
    %100 = vmatpush.msra.mxu0 %v76
    %101 = vmatpush.msra.mxu0 %v75
    %102 = vmatpush.msra.mxu0 %v74
    %103 = vmatpush.msra.mxu0 %v73
    %104 = vmatpush.msra.mxu0 %v72
    %105 = vmatpush.msra.mxu0 %v71
    %106 = vmatmul.f32.gmra.mxu0 %v36
    %v107 = vpop.f32.mrf.mxu0
    %v108 = vadd.f32 %v88, %v107
    %109 = vmatmul.f32.gmra.mxu0 %v37
    %v110 = vpop.f32.mrf.mxu0
    %v111 = vadd.f32 %v88, %v110
    %112 = vmatmul.f32.gmra.mxu0 %v38
    %v113 = vpop.f32.mrf.mxu0
    %v114 = vadd.f32 %v88, %v113
    %115 = vmatmul.f32.gmra.mxu0 %v39
    %v116 = vpop.f32.mrf.mxu0
    %v117 = vadd.f32 %v88, %v116
    %118 = vmatmul.f32.gmra.mxu0 %v40
    %v119 = vpop.f32.mrf.mxu0
    %v120 = vadd.f32 %v88, %v119
    %121 = vmatmul.f32.gmra.mxu0 %v41
    %v122 = vpop.f32.mrf.mxu0
    %v123 = vadd.f32 %v88, %v122
    %124 = vmatmul.f32.gmra.mxu0 %v42
    %v125 = vpop.f32.mrf.mxu0
    %v126 = vadd.f32 %v88, %v125
    %127 = vmatmul.f32.gmra.mxu0 %v43
    %v128 = vpop.f32.mrf.mxu0
    %v129 = vadd.f32 %v88, %v128
    %130 = vmatmul.f32.gmra.mxu0 %v44
    %v131 = vpop.f32.mrf.mxu0
    %v132 = vadd.f32 %v88, %v131
    %133 = vmatmul.f32.gmra.mxu0 %v45
    %v134 = vpop.f32.mrf.mxu0
    %v135 = vadd.f32 %v88, %v134
    %136 = vmatmul.f32.gmra.mxu0 %v46
    %v137 = vpop.f32.mrf.mxu0
    %v138 = vadd.f32 %v88, %v137
    %139 = vmatmul.f32.gmra.mxu0 %v47
    %v140 = vpop.f32.mrf.mxu0
    %v141 = vadd.f32 %v88, %v140
    %142 = vmatmul.f32.gmra.mxu0 %v48
    %v143 = vpop.f32.mrf.mxu0
    %v144 = vadd.f32 %v88, %v143
    %145 = vmatmul.f32.gmra.mxu0 %v49
    %v146 = vpop.f32.mrf.mxu0
    %v147 = vadd.f32 %v88, %v146
    %148 = vmatmul.f32.gmra.mxu0 %v50
    %v149 = vpop.f32.mrf.mxu0
    %v150 = vadd.f32 %v88, %v149
    %151 = vmatmul.f32.gmra.mxu0 %v51
    %v152 = vpop.f32.mrf.mxu0
    %v153 = vadd.f32 %v88, %v152
    %154 = vmatmul.f32.gmra.mxu0 %v52
    %v155 = vpop.f32.mrf.mxu0
    %v156 = vadd.f32 %v88, %v155
    %157 = vmatmul.f32.gmra.mxu0 %v53
    %v158 = vpop.f32.mrf.mxu0
    %v159 = vadd.f32 %v88, %v158
    %160 = vmatmul.f32.gmra.mxu0 %v54
    %v161 = vpop.f32.mrf.mxu0
    %v162 = vadd.f32 %v88, %v161
    %163 = vmatmul.f32.gmra.mxu0 %v55
    %v164 = vpop.f32.mrf.mxu0
    %v165 = vadd.f32 %v88, %v164
    %166 = vmatmul.f32.gmra.mxu0 %v56
    %v167 = vpop.f32.mrf.mxu0
    %v168 = vadd.f32 %v88, %v167
    %169 = vmatmul.f32.gmra.mxu0 %v57
    %v170 = vpop.f32.mrf.mxu0
    %v171 = vadd.f32 %v88, %v170
    %172 = vmatmul.f32.gmra.mxu0 %v58
    %v173 = vpop.f32.mrf.mxu0
    %v174 = vadd.f32 %v88, %v173
    %175 = vmatmul.f32.gmra.mxu0 %v59
    %v176 = vpop.f32.mrf.mxu0
    %v177 = vadd.f32 %v88, %v176
    %178 = vmatmul.f32.gmra.mxu0 %v60
    %v179 = vpop.f32.mrf.mxu0
    %v180 = vadd.f32 %v88, %v179
    %181 = vmatmul.f32.gmra.mxu0 %v61
    %v182 = vpop.f32.mrf.mxu0
    %v183 = vadd.f32 %v88, %v182
    %184 = vmatmul.f32.gmra.mxu0 %v62
    %v185 = vpop.f32.mrf.mxu0
    %v186 = vadd.f32 %v88, %v185
    %187 = vmatmul.f32.gmra.mxu0 %v63
    %v188 = vpop.f32.mrf.mxu0
    %v189 = vadd.f32 %v88, %v188
    %190 = vmatmul.f32.gmra.mxu0 %v64
    %v191 = vpop.f32.mrf.mxu0
    %v192 = vadd.f32 %v88, %v191
    %193 = vmatmul.f32.gmra.mxu0 %v65
    %v194 = vpop.f32.mrf.mxu0
    %v195 = vadd.f32 %v88, %v194
    %196 = vmatmul.f32.gmra.mxu0 %v66
    %v197 = vpop.f32.mrf.mxu0
    %v198 = vadd.f32 %v88, %v197
    %199 = vmatmul.f32.gmra.mxu0 %v67
    %v200 = vpop.f32.mrf.mxu0
    %v201 = vadd.f32 %v88, %v200
    %202 = vdwg.mxu0
    %v203 = vmax.f32 %v108, 0.0
    %v204 = vmax.f32 %v111, 0.0
    %v205 = vmax.f32 %v114, 0.0
    %v206 = vmax.f32 %v117, 0.0
    %v207 = vmax.f32 %v120, 0.0
    %v208 = vmax.f32 %v123, 0.0
    %v209 = vmax.f32 %v126, 0.0
    %v210 = vmax.f32 %v129, 0.0
    %v211 = vmax.f32 %v132, 0.0
    %v212 = vmax.f32 %v135, 0.0
    %v213 = vmax.f32 %v138, 0.0
    %v214 = vmax.f32 %v141, 0.0
    %v215 = vmax.f32 %v144, 0.0
    %v216 = vmax.f32 %v147, 0.0
    %v217 = vmax.f32 %v150, 0.0
    %v218 = vmax.f32 %v153, 0.0
    %v219 = vmax.f32 %v156, 0.0
    %v220 = vmax.f32 %v159, 0.0
    %v221 = vmax.f32 %v162, 0.0
    %v222 = vmax.f32 %v165, 0.0
    %v223 = vmax.f32 %v168, 0.0
    %v224 = vmax.f32 %v171, 0.0
    %v225 = vmax.f32 %v174, 0.0
    %v226 = vmax.f32 %v177, 0.0
    %v227 = vmax.f32 %v180, 0.0
    %v228 = vmax.f32 %v183, 0.0
    %v229 = vmax.f32 %v186, 0.0
    %v230 = vmax.f32 %v189, 0.0
    %v231 = vmax.f32 %v192, 0.0
    %v232 = vmax.f32 %v195, 0.0
    %v233 = vmax.f32 %v198, 0.0
    %v234 = vmax.f32 %v201, 0.0
    %v235 = vld [vmem:[%s2] sm:$0xff]
    %v236 = vld [vmem:[%s2 + $0x8] sm:$0xff]
    %v237 = vld [vmem:[%s2 + $0x10] sm:$0xff]
    %v238 = vld [vmem:[%s2 + $0x18] sm:$0xff]
    %v239 = vld [vmem:[%s2 + $0x20] sm:$0xff]
    %v240 = vld [vmem:[%s2 + $0x28] sm:$0xff]
    %v241 = vld [vmem:[%s2 + $0x30] sm:$0xff]
    %v242 = vld [vmem:[%s2 + $0x38] sm:$0xff]
    %v243 = vld [vmem:[%s2 + $0x40] sm:$0xff]
    %v244 = vld [vmem:[%s2 + $0x48] sm:$0xff]
    %v245 = vld [vmem:[%s2 + $0x50] sm:$0xff]
    %v246 = vld [vmem:[%s2 + $0x58] sm:$0xff]
    %v247 = vld [vmem:[%s2 + $0x60] sm:$0xff]
    %v248 = vld [vmem:[%s2 + $0x68] sm:$0xff]
    %v249 = vld [vmem:[%s2 + $0x70] sm:$0xff]
    %v250 = vld [vmem:[%s2 + $0x78] sm:$0xff]
    %v252 = vperm.slane %v69, 0
    %254 = vmatpush.msra.mxu0 %v250
    %255 = vmatpush.msra.mxu0 %v249
    %256 = vmatpush.msra.mxu0 %v248
    %257 = vmatpush.msra.mxu0 %v247
    %258 = vmatpush.msra.mxu0 %v246
    %259 = vmatpush.msra.mxu0 %v245
    %260 = vmatpush.msra.mxu0 %v244
    %261 = vmatpush.msra.mxu0 %v243
    %262 = vmatpush.msra.mxu0 %v242
    %263 = vmatpush.msra.mxu0 %v241
    %264 = vmatpush.msra.mxu0 %v240
    %265 = vmatpush.msra.mxu0 %v239
    %266 = vmatpush.msra.mxu0 %v238
    %267 = vmatpush.msra.mxu0 %v237
    %268 = vmatpush.msra.mxu0 %v236
    %269 = vmatpush.msra.mxu0 %v235
    %270 = vmatmul.f32.gmra.mxu0 %v203
    %v271 = vpop.f32.mrf.mxu0
    %v272 = vadd.f32 %v252, %v271
    %273 = vmatmul.f32.gmra.mxu0 %v204
    %v274 = vpop.f32.mrf.mxu0
    %v275 = vadd.f32 %v252, %v274
    %276 = vmatmul.f32.gmra.mxu0 %v205
    %v277 = vpop.f32.mrf.mxu0
    %v278 = vadd.f32 %v252, %v277
    %279 = vmatmul.f32.gmra.mxu0 %v206
    %v280 = vpop.f32.mrf.mxu0
    %v281 = vadd.f32 %v252, %v280
    %282 = vmatmul.f32.gmra.mxu0 %v207
    %v283 = vpop.f32.mrf.mxu0
    %v284 = vadd.f32 %v252, %v283
    %285 = vmatmul.f32.gmra.mxu0 %v208
    %v286 = vpop.f32.mrf.mxu0
    %v287 = vadd.f32 %v252, %v286
    %288 = vmatmul.f32.gmra.mxu0 %v209
    %v289 = vpop.f32.mrf.mxu0
    %v290 = vadd.f32 %v252, %v289
    %291 = vmatmul.f32.gmra.mxu0 %v210
    %v292 = vpop.f32.mrf.mxu0
    %v293 = vadd.f32 %v252, %v292
    %294 = vmatmul.f32.gmra.mxu0 %v211
    %v295 = vpop.f32.mrf.mxu0
    %v296 = vadd.f32 %v252, %v295
    %297 = vmatmul.f32.gmra.mxu0 %v212
    %v298 = vpop.f32.mrf.mxu0
    %v299 = vadd.f32 %v252, %v298
    %300 = vmatmul.f32.gmra.mxu0 %v213
    %v301 = vpop.f32.mrf.mxu0
    %v302 = vadd.f32 %v252, %v301
    %303 = vmatmul.f32.gmra.mxu0 %v214
    %v304 = vpop.f32.mrf.mxu0
    %v305 = vadd.f32 %v252, %v304
    %306 = vmatmul.f32.gmra.mxu0 %v215
    %v307 = vpop.f32.mrf.mxu0
    %v308 = vadd.f32 %v252, %v307
    %309 = vmatmul.f32.gmra.mxu0 %v216
    %v310 = vpop.f32.mrf.mxu0
    %v311 = vadd.f32 %v252, %v310
    %312 = vmatmul.f32.gmra.mxu0 %v217
    %v313 = vpop.f32.mrf.mxu0
    %v314 = vadd.f32 %v252, %v313
    %315 = vmatmul.f32.gmra.mxu0 %v218
    %v316 = vpop.f32.mrf.mxu0
    %v317 = vadd.f32 %v252, %v316
    %318 = vmatmul.f32.gmra.mxu0 %v219
    %v319 = vpop.f32.mrf.mxu0
    %v320 = vadd.f32 %v252, %v319
    %321 = vmatmul.f32.gmra.mxu0 %v220
    %v322 = vpop.f32.mrf.mxu0
    %v323 = vadd.f32 %v252, %v322
    %324 = vmatmul.f32.gmra.mxu0 %v221
    %v325 = vpop.f32.mrf.mxu0
    %v326 = vadd.f32 %v252, %v325
    %327 = vmatmul.f32.gmra.mxu0 %v222
    %v328 = vpop.f32.mrf.mxu0
    %v329 = vadd.f32 %v252, %v328
    %330 = vmatmul.f32.gmra.mxu0 %v223
    %v331 = vpop.f32.mrf.mxu0
    %v332 = vadd.f32 %v252, %v331
    %333 = vmatmul.f32.gmra.mxu0 %v224
    %v334 = vpop.f32.mrf.mxu0
    %v335 = vadd.f32 %v252, %v334
    %336 = vmatmul.f32.gmra.mxu0 %v225
    %v337 = vpop.f32.mrf.mxu0
    %v338 = vadd.f32 %v252, %v337
    %339 = vmatmul.f32.gmra.mxu0 %v226
    %v340 = vpop.f32.mrf.mxu0
    %v341 = vadd.f32 %v252, %v340
    %342 = vmatmul.f32.gmra.mxu0 %v227
    %v343 = vpop.f32.mrf.mxu0
    %v344 = vadd.f32 %v252, %v343
    %345 = vmatmul.f32.gmra.mxu0 %v228
    %v346 = vpop.f32.mrf.mxu0
    %v347 = vadd.f32 %v252, %v346
    %348 = vmatmul.f32.gmra.mxu0 %v229
    %v349 = vpop.f32.mrf.mxu0
    %v350 = vadd.f32 %v252, %v349
    %351 = vmatmul.f32.gmra.mxu0 %v230
    %v352 = vpop.f32.mrf.mxu0
    %v353 = vadd.f32 %v252, %v352
    %354 = vmatmul.f32.gmra.mxu0 %v231
    %v355 = vpop.f32.mrf.mxu0
    %v356 = vadd.f32 %v252, %v355
    %357 = vmatmul.f32.gmra.mxu0 %v232
    %v358 = vpop.f32.mrf.mxu0
    %v359 = vadd.f32 %v252, %v358
    %360 = vmatmul.f32.gmra.mxu0 %v233
    %v361 = vpop.f32.mrf.mxu0
    %v362 = vadd.f32 %v252, %v361
    %363 = vmatmul.f32.gmra.mxu0 %v234
    %v364 = vpop.f32.mrf.mxu0
    %v365 = vadd.f32 %v252, %v364
    %366 = vdwg.mxu0
    %v367 = vmax.f32 %v272, 0.0
    %v368 = vmax.f32 %v275, 0.0
    %v369 = vmax.f32 %v278, 0.0
    %v370 = vmax.f32 %v281, 0.0
    %v371 = vmax.f32 %v284, 0.0
    %v372 = vmax.f32 %v287, 0.0
    %v373 = vmax.f32 %v290, 0.0
    %v374 = vmax.f32 %v293, 0.0
    %v375 = vmax.f32 %v296, 0.0
    %v376 = vmax.f32 %v299, 0.0
    %v377 = vmax.f32 %v302, 0.0
    %v378 = vmax.f32 %v305, 0.0
    %v379 = vmax.f32 %v308, 0.0
    %v380 = vmax.f32 %v311, 0.0
    %v381 = vmax.f32 %v314, 0.0
    %v382 = vmax.f32 %v317, 0.0
    %v383 = vmax.f32 %v320, 0.0
    %v384 = vmax.f32 %v323, 0.0
    %v385 = vmax.f32 %v326, 0.0
    %v386 = vmax.f32 %v329, 0.0
    %v387 = vmax.f32 %v332, 0.0
    %v388 = vmax.f32 %v335, 0.0
    %v389 = vmax.f32 %v338, 0.0
    %v390 = vmax.f32 %v341, 0.0
    %v391 = vmax.f32 %v344, 0.0
    %v392 = vmax.f32 %v347, 0.0
    %v393 = vmax.f32 %v350, 0.0
    %v394 = vmax.f32 %v353, 0.0
    %v395 = vmax.f32 %v356, 0.0
    %v396 = vmax.f32 %v359, 0.0
    %v397 = vmax.f32 %v362, 0.0
    %v398 = vmax.f32 %v365, 0.0
    %v399 = vld [vmem:[#allocation2] sm:$0xff]
    %v400 = vld [vmem:[#allocation2 + $0x8] sm:$0xff]
    %v401 = vld [vmem:[#allocation2 + $0x10] sm:$0xff]
    %v402 = vld [vmem:[#allocation2 + $0x18] sm:$0xff]
    %v403 = vld [vmem:[#allocation2 + $0x20] sm:$0xff]
    %v404 = vld [vmem:[#allocation2 + $0x28] sm:$0xff]
    %v405 = vld [vmem:[#allocation2 + $0x30] sm:$0xff]
    %v406 = vld [vmem:[#allocation2 + $0x38] sm:$0xff]
    %v407 = vld [vmem:[#allocation2 + $0x40] sm:$0xff]
    %v408 = vld [vmem:[#allocation2 + $0x48] sm:$0xff]
    %v409 = vld [vmem:[#allocation2 + $0x50] sm:$0xff]
    %v410 = vld [vmem:[#allocation2 + $0x58] sm:$0xff]
    %v411 = vld [vmem:[#allocation2 + $0x60] sm:$0xff]
    %v412 = vld [vmem:[#allocation2 + $0x68] sm:$0xff]
    %v413 = vld [vmem:[#allocation2 + $0x70] sm:$0xff]
    %v414 = vld [vmem:[#allocation2 + $0x78] sm:$0xff]
    %v416 = vperm.slane %v70, 0
    %418 = vmatpush.msra.mxu0 %v414
    %419 = vmatpush.msra.mxu0 %v413
    %420 = vmatpush.msra.mxu0 %v412
    %421 = vmatpush.msra.mxu0 %v411
    %422 = vmatpush.msra.mxu0 %v410
    %423 = vmatpush.msra.mxu0 %v409
    %424 = vmatpush.msra.mxu0 %v408
    %425 = vmatpush.msra.mxu0 %v407
    %426 = vmatpush.msra.mxu0 %v406
    %427 = vmatpush.msra.mxu0 %v405
    %428 = vmatpush.msra.mxu0 %v404
    %429 = vmatpush.msra.mxu0 %v403
    %430 = vmatpush.msra.mxu0 %v402
    %431 = vmatpush.msra.mxu0 %v401
    %432 = vmatpush.msra.mxu0 %v400
    %433 = vmatpush.msra.mxu0 %v399
    %434 = vmatmul.f32.gmra.mxu0 %v367
    %v435 = vpop.f32.mrf.mxu0
    %v436 = vadd.f32 %v416, %v435
    %437 = vmatmul.f32.gmra.mxu0 %v368
    %v438 = vpop.f32.mrf.mxu0
    %v439 = vadd.f32 %v416, %v438
    %440 = vmatmul.f32.gmra.mxu0 %v369
    %v441 = vpop.f32.mrf.mxu0
    %v442 = vadd.f32 %v416, %v441
    %443 = vmatmul.f32.gmra.mxu0 %v370
    %v444 = vpop.f32.mrf.mxu0
    %v445 = vadd.f32 %v416, %v444
    %446 = vmatmul.f32.gmra.mxu0 %v371
    %v447 = vpop.f32.mrf.mxu0
    %v448 = vadd.f32 %v416, %v447
    %449 = vmatmul.f32.gmra.mxu0 %v372
    %v450 = vpop.f32.mrf.mxu0
    %v451 = vadd.f32 %v416, %v450
    %452 = vmatmul.f32.gmra.mxu0 %v373
    %v453 = vpop.f32.mrf.mxu0
    %v454 = vadd.f32 %v416, %v453
    %455 = vmatmul.f32.gmra.mxu0 %v374
    %v456 = vpop.f32.mrf.mxu0
    %v457 = vadd.f32 %v416, %v456
    %458 = vmatmul.f32.gmra.mxu0 %v375
    %v459 = vpop.f32.mrf.mxu0
    %v460 = vadd.f32 %v416, %v459
    %461 = vmatmul.f32.gmra.mxu0 %v376
    %v462 = vpop.f32.mrf.mxu0
    %v463 = vadd.f32 %v416, %v462
    %464 = vmatmul.f32.gmra.mxu0 %v377
    %v465 = vpop.f32.mrf.mxu0
    %v466 = vadd.f32 %v416, %v465
    %467 = vmatmul.f32.gmra.mxu0 %v378
    %v468 = vpop.f32.mrf.mxu0
    %v469 = vadd.f32 %v416, %v468
    %470 = vmatmul.f32.gmra.mxu0 %v379
    %v471 = vpop.f32.mrf.mxu0
    %v472 = vadd.f32 %v416, %v471
    %473 = vmatmul.f32.gmra.mxu0 %v380
    %v474 = vpop.f32.mrf.mxu0
    %v475 = vadd.f32 %v416, %v474
    %476 = vmatmul.f32.gmra.mxu0 %v381
    %v477 = vpop.f32.mrf.mxu0
    %v478 = vadd.f32 %v416, %v477
    %479 = vmatmul.f32.gmra.mxu0 %v382
    %v480 = vpop.f32.mrf.mxu0
    %v481 = vadd.f32 %v416, %v480
    %482 = vmatmul.f32.gmra.mxu0 %v383
    %v483 = vpop.f32.mrf.mxu0
    %v484 = vadd.f32 %v416, %v483
    %485 = vmatmul.f32.gmra.mxu0 %v384
    %v486 = vpop.f32.mrf.mxu0
    %v487 = vadd.f32 %v416, %v486
    %488 = vmatmul.f32.gmra.mxu0 %v385
    %v489 = vpop.f32.mrf.mxu0
    %v490 = vadd.f32 %v416, %v489
    %491 = vmatmul.f32.gmra.mxu0 %v386
    %v492 = vpop.f32.mrf.mxu0
    %v493 = vadd.f32 %v416, %v492
    %494 = vmatmul.f32.gmra.mxu0 %v387
    %v495 = vpop.f32.mrf.mxu0
    %v496 = vadd.f32 %v416, %v495
    %497 = vmatmul.f32.gmra.mxu0 %v388
    %v498 = vpop.f32.mrf.mxu0
    %v499 = vadd.f32 %v416, %v498
    %500 = vmatmul.f32.gmra.mxu0 %v389
    %v501 = vpop.f32.mrf.mxu0
    %v502 = vadd.f32 %v416, %v501
    %503 = vmatmul.f32.gmra.mxu0 %v390
    %v504 = vpop.f32.mrf.mxu0
    %v505 = vadd.f32 %v416, %v504
    %506 = vmatmul.f32.gmra.mxu0 %v391
    %v507 = vpop.f32.mrf.mxu0
    %v508 = vadd.f32 %v416, %v507
    %509 = vmatmul.f32.gmra.mxu0 %v392
    %v510 = vpop.f32.mrf.mxu0
    %v511 = vadd.f32 %v416, %v510
    %512 = vmatmul.f32.gmra.mxu0 %v393
    %v513 = vpop.f32.mrf.mxu0
    %v514 = vadd.f32 %v416, %v513
    %515 = vmatmul.f32.gmra.mxu0 %v394
    %v516 = vpop.f32.mrf.mxu0
    %v517 = vadd.f32 %v416, %v516
    %518 = vmatmul.f32.gmra.mxu0 %v395
    %v519 = vpop.f32.mrf.mxu0
    %v520 = vadd.f32 %v416, %v519
    %521 = vmatmul.f32.gmra.mxu0 %v396
    %v522 = vpop.f32.mrf.mxu0
    %v523 = vadd.f32 %v416, %v522
    %524 = vmatmul.f32.gmra.mxu0 %v397
    %v525 = vpop.f32.mrf.mxu0
    %v526 = vadd.f32 %v416, %v525
    %527 = vmatmul.f32.gmra.mxu0 %v398
    %v528 = vpop.f32.mrf.mxu0
    %v529 = vadd.f32 %v416, %v528
    %530 = vdwg.mxu0
    %531 = vst [vmem:[%s5] sm:$0xff] %v436
    %532 = vst [vmem:[%s5 + $0x8] sm:$0xff] %v439
    %533 = vst [vmem:[%s5 + $0x10] sm:$0xff] %v442
    %534 = vst [vmem:[%s5 + $0x18] sm:$0xff] %v445
    %535 = vst [vmem:[%s5 + $0x20] sm:$0xff] %v448
    %536 = vst [vmem:[%s5 + $0x28] sm:$0xff] %v451
    %537 = vst [vmem:[%s5 + $0x30] sm:$0xff] %v454
    %538 = vst [vmem:[%s5 + $0x38] sm:$0xff] %v457
    %539 = vst [vmem:[%s5 + $0x40] sm:$0xff] %v460
    %540 = vst [vmem:[%s5 + $0x48] sm:$0xff] %v463
    %541 = vst [vmem:[%s5 + $0x50] sm:$0xff] %v466
    %542 = vst [vmem:[%s5 + $0x58] sm:$0xff] %v469
    %543 = vst [vmem:[%s5 + $0x60] sm:$0xff] %v472
    %544 = vst [vmem:[%s5 + $0x68] sm:$0xff] %v475
    %545 = vst [vmem:[%s5 + $0x70] sm:$0xff] %v478
    %546 = vst [vmem:[%s5 + $0x78] sm:$0xff] %v481
    %547 = vst [vmem:[%s5 + $0x80] sm:$0xff] %v484
    %548 = vst [vmem:[%s5 + $0x88] sm:$0xff] %v487
    %549 = vst [vmem:[%s5 + $0x90] sm:$0xff] %v490
    %550 = vst [vmem:[%s5 + $0x98] sm:$0xff] %v493
    %551 = vst [vmem:[%s5 + $0xa0] sm:$0xff] %v496
    %552 = vst [vmem:[%s5 + $0xa8] sm:$0xff] %v499
    %553 = vst [vmem:[%s5 + $0xb0] sm:$0xff] %v502
    %554 = vst [vmem:[%s5 + $0xb8] sm:$0xff] %v505
    %555 = vst [vmem:[%s5 + $0xc0] sm:$0xff] %v508
    %556 = vst [vmem:[%s5 + $0xc8] sm:$0xff] %v511
    %557 = vst [vmem:[%s5 + $0xd0] sm:$0xff] %v514
    %558 = vst [vmem:[%s5 + $0xd8] sm:$0xff] %v517
    %559 = vst [vmem:[%s5 + $0xe0] sm:$0xff] %v520
    %560 = vst [vmem:[%s5 + $0xe8] sm:$0xff] %v523
    %561 = vst [vmem:[%s5 + $0xf0] sm:$0xff] %v526
    %562 = vst [vmem:[%s5 + $0xf8] sm:$0xff] %v529
    // Predicated region
    $region26: #{sae_classifier_forward.1} parent=1 // pred_check
      _
    $region27: #{sae_classifier_forward.1} parent=1 // pred_check_branch
      %564 = sbr.rel (0) target = $region29
    $region28: #{sae_classifier_forward.1} parent=1 // pred_region
      _
    $region29: #{sae_classifier_forward.1} parent=1 // pred_fallthru
      _
    // Predicated region
    $region30: #{sae_classifier_forward.1} parent=1 // pred_check
      _
    $region31: #{sae_classifier_forward.1} parent=1 // pred_check_branch
      %566 = sbr.rel (0) target = $region33
    $region32: #{sae_classifier_forward.1} parent=1 // pred_region
      _
    $region33: #{sae_classifier_forward.1} parent=1 // pred_fallthru
      _
    %567 = vsyncpa [#allocation3], 1

</llo_original>
